<compile_context>
chip_gen: v6e
topology: v6e:2x2x1
jax: 0.10.0
libtpu: 0.0.40
codegen_flags: <defaults>
</compile_context>

<pallas_src>
import functools
import math

import jax
import jax.numpy as jnp
from jax import lax
from jax.experimental import pallas as pl
from jax.experimental.pallas import tpu as pltpu

_LANE = 128


# --------------------------------------------------------------------------
# hardware-aware budgets
# --------------------------------------------------------------------------
def _tpu_vmem_capacity_bytes():
    """Physical VMEM per TensorCore; conservative (v7x) fallback if unknown."""
    try:
        info = pltpu.get_tpu_info()
        for name in ("vmem_capacity_bytes", "vmem_size_bytes", "vmem_bytes"):
            v = getattr(info, name, None)
            if v:
                return int(v)
    except Exception:
        pass
    return 64 << 20          # v7x per-TC VMEM; safe lower bound everywhere


def _vmem_limit_bytes(block_bytes, cap, scratch_bytes=0):
    # Every BlockSpec-managed block is double-buffered by the Pallas pipeline;
    # add slack for compiler-internal scratch, clamp under the per-generation cap.
    need = 2 * sum(block_bytes) + scratch_bytes + (4 << 20)
    return int(min(max(need, 16 << 20), cap))


def _pick_hw_tile(hw, c, itemsize, target_bytes, max_lanes=None):
    """HW tile length L (lanes).  Prefers a multiple-of-128 exact divisor of hw
    near the byte target; otherwise returns a multiple-of-128 length for a
    cdiv grid (last tile masked in-kernel)."""
    lane_budget = target_bytes // max(1, c * itemsize)
    if max_lanes is not None:
        lane_budget = min(lane_budget, int(max_lanes))
    lane_budget = int(max(_LANE, lane_budget - (lane_budget % _LANE)))
    if hw <= lane_budget:
        return hw                               # single full-HW tile (always legal)
    if hw % _LANE == 0:
        best = 0
        for cand in range(_LANE, lane_budget + 1, _LANE):
            if hw % cand == 0:
                best = cand
        if best and (2 * best >= lane_budget or best == hw):
            return best                          # exact divisor, no boundary blocks
    return lane_budget                           # cdiv grid + masked last tile


# --------------------------------------------------------------------------
# in-kernel helpers
# --------------------------------------------------------------------------
def _spatial_max_f32(x, *, valid=None):
    """Per-channel max over the last (spatial / lane) axis of a (1, C, L) tile.

    Bulk of the reduction is elementwise VPU maxima over aligned 128-lane
    chunks in the native dtype (max is rounding-exact) via a tree of depth
    log2(#leaves) with <= 64 leaves, leaving one cross-lane reduce at the end.
    `valid` (traced scalar), if given, masks lanes >= valid with -inf (used for
    the partial last HW tile).  Returns (1, C) float32.
    """
    L = x.shape[-1]
    if valid is not None:
        lane = lax.broadcasted_iota(jnp.int32, x.shape, x.ndim - 1)
        x = jnp.where(lane < valid, x, jnp.array(-jnp.inf, x.dtype))

    if L % _LANE == 0 and L > _LANE:
        n128 = L // _LANE
        group = -(-n128 // 64)                  # ceil -> #128-blocks per leaf
        chunk = group * _LANE
        parts = [x[:, :, o:o + chunk] for o in range(0, L - chunk + 1, chunk)]
        tail = L - len(parts) * chunk           # multiple of 128, < chunk
        while len(parts) > 1:                   # balanced tree of VPU maxima
            nxt = [jnp.maximum(a, b) for a, b in zip(parts[::2], parts[1::2])]
            if len(parts) % 2:
                nxt.append(parts[-1])
            parts = nxt
        m = jnp.max(parts[0], axis=-1)
        if tail:
            m = jnp.maximum(m, jnp.max(x[:, :, L - tail:], axis=-1))
        return m.astype(jnp.float32)

    return jnp.max(x, axis=-1).astype(jnp.float32)


def _channel_conv_sigmoid(m, w_ref, ksize):
    """Conv1d(1, 1, ksize, pad=ksize//2, bias=False) along channels + sigmoid.

    m: (1, C) float32 channel descriptor, w_ref: SMEM (1, ksize) weights.
    O(C*ksize) work -- completely off the critical path, so a simple unrolled
    shift-and-scale in f32 is used (no MXU).
    """
    C = m.shape[-1]
    pad = ksize // 2
    if pad > 0:
        z = jnp.zeros((1, pad), jnp.float32)
        m_pad = jnp.concatenate([z, m, z], axis=-1)
    else:
        m_pad = m
    acc = jnp.zeros((1, C), jnp.float32)
    for j in range(ksize):
        acc = acc + w_ref[0, j] * m_pad[:, j:j + C]
    return jax.nn.sigmoid(acc)


# --------------------------------------------------------------------------
# kernels
# --------------------------------------------------------------------------
def _eca_fused_kernel(w_ref, x_ref, o_ref, *, ksize):
    """One batch element per grid step: whole (1, C, HW) slab stays in VMEM."""
    x = x_ref[...]                                          # native dtype slab
    attn = _channel_conv_sigmoid(_spatial_max_f32(x), w_ref, ksize)   # (1, C) f32
    # NOTE: attn is rounded to x.dtype before the multiply (bf16 inputs incur a
    # tiny double-rounding vs. an f32 multiply); keeps VMEM/vst traffic native.
    o_ref[...] = x * attn[:, :, None].astype(x.dtype)


def _eca_reduce_kernel(x_ref, pmax_ref, *, split, tiles_per_split, tile_l,
                       hw_rem, total_tiles):
    """grid=(B*S, T/S): accumulate per-split spatial maxima over HW tiles into
    the resident (1, 1, C) output block.  The last (partial) HW tile is masked
    with -inf when HW is not a multiple of the tile length."""
    t = pl.program_id(1)

    valid = None
    if hw_rem:                                   # only when HW % tile_l != 0
        i = pl.program_id(0)
        j = t if split == 1 else (i % split) * tiles_per_split + t
        valid = jnp.where(j == total_tiles - 1, hw_rem, tile_l)

    m = _spatial_max_f32(x_ref[...], valid=valid)           # (1, C) f32

    @pl.when(t == 0)
    def _init():
        pmax_ref[...] = m[:, None, :]

    @pl.when(t != 0)
    def _acc():
        pmax_ref[...] = jnp.maximum(pmax_ref[...], m[:, None, :])


def _eca_scale_kernel(w_ref, pmax_ref, x_ref, o_ref, *, ksize):
    """grid=(B, T), both axes parallel: combine the S partial maxima, run the
    tiny channel conv + sigmoid (negligible recompute), broadcast-multiply."""
    m = jnp.max(pmax_ref[...], axis=0)                      # (S,1,C) -> (1,C) f32
    attn = _channel_conv_sigmoid(m, w_ref, ksize)           # (1, C) f32
    x = x_ref[...]
    o_ref[...] = x * attn[:, :, None].astype(x.dtype)       # native-dtype mul+store


# --------------------------------------------------------------------------
# wrapper
# --------------------------------------------------------------------------
def eca_net_forward(x_nchw, conv_weight, *, mode="auto",
                    hw_tile_target_bytes=None, max_hw_tile_lanes=None,
                    donate_x=False):
    """x_nchw: (B, C, H, W); conv_weight: (1, 1, k) as in nn.Conv1d(1, 1, k)."""
    B, C, H, W = x_nchw.shape
    HW = H * W
    ksize = int(conv_weight.shape[-1])
    itemsize = jnp.dtype(x_nchw.dtype).itemsize
    slab_bytes = C * HW * itemsize

    vmem_cap = _tpu_vmem_capacity_bytes()
    vmem_clamp = (vmem_cap * 3) // 4            # 48 MiB on v7x, 96 MiB on v5e/v6e
    if hw_tile_target_bytes is None:
        hw_tile_target_bytes = int(min(16 << 20, max(2 << 20, vmem_cap // 10)))

    x_flat = x_nchw.reshape(B, C, HW)
    w2d = conv_weight.reshape(1, ksize).astype(jnp.float32)

    if mode == "auto":
        # fused = 1 read + 1 write of x; take it whenever 2x(in+out) slabs fit.
        mode = "fused" if (4 * slab_bytes + (6 << 20)) <= vmem_clamp else "tiled"

    if mode == "fused":
        out_flat = pl.pallas_call(
            functools.partial(_eca_fused_kernel, ksize=ksize),
            out_shape=jax.ShapeDtypeStruct((B, C, HW), x_flat.dtype),
            grid_spec=pltpu.PrefetchScalarGridSpec(
                num_scalar_prefetch=0,
                grid=(B,),
                in_specs=[
                    pl.BlockSpec(memory_space=pltpu.SMEM),            # conv weight
                    pl.BlockSpec((1, C, HW), lambda b: (b, 0, 0)),    # x slab
                ],
                out_specs=pl.BlockSpec((1, C, HW), lambda b: (b, 0, 0)),
            ),
            compiler_params=pltpu.CompilerParams(
                dimension_semantics=("parallel",),
                vmem_limit_bytes=_vmem_limit_bytes([slab_bytes, slab_bytes],
                                                   vmem_clamp)),
            input_output_aliases=({1: 0} if donate_x else {}),
        )(w2d, x_flat)
        return out_flat.reshape(B, C, H, W)

    # ---------------- tiled two-pass path ----------------
    L = _pick_hw_tile(HW, C, itemsize, hw_tile_target_bytes, max_hw_tile_lanes)
    T = -(-HW // L)                              # cdiv
    rem = HW % L                                 # >0 -> masked last tile
    S = 2 if (T >= 2 and T % 2 == 0) else 1      # HW split so B*S >= 2 parallel units
    T_s = T // S
    tile_bytes = C * L * itemsize
    part_bytes = C * 4

    if S == 1:
        x_map1 = lambda i, t: (i, 0, t)
    else:
        x_map1 = lambda i, t: (i // S, 0, (i % S) * T_s + t)

    # pass 1: spatial-max reduction -> (B*S, 1, C) f32 partial maxima
    pmax = pl.pallas_call(
        functools.partial(_eca_reduce_kernel, split=S, tiles_per_split=T_s,
                          tile_l=L, hw_rem=rem, total_tiles=T),
        out_shape=jax.ShapeDtypeStruct((B * S, 1, C), jnp.float32),
        grid_spec=pltpu.PrefetchScalarGridSpec(
            num_scalar_prefetch=0,
            grid=(B * S, T_s),
            in_specs=[pl.BlockSpec((1, C, L), x_map1)],
            out_specs=pl.BlockSpec((1, 1, C), lambda i, t: (i, 0, 0)),
        ),
        compiler_params=pltpu.CompilerParams(
            dimension_semantics=("parallel", "arbitrary"),
            vmem_limit_bytes=_vmem_limit_bytes([tile_bytes, part_bytes],
                                               vmem_clamp)),
    )(x_flat)

    # pass 2: combine partials + tiny conv/sigmoid + lane-dense broadcast multiply
    out_flat = pl.pallas_call(
        functools.partial(_eca_scale_kernel, ksize=ksize),
        out_shape=jax.ShapeDtypeStruct((B, C, HW), x_flat.dtype),
        grid_spec=pltpu.PrefetchScalarGridSpec(
            num_scalar_prefetch=0,
            grid=(B, T),
            in_specs=[
                pl.BlockSpec(memory_space=pltpu.SMEM),              # conv weight
                pl.BlockSpec((S, 1, C), lambda b, t: (b, 0, 0)),    # partial maxima
                pl.BlockSpec((1, C, L), lambda b, t: (b, 0, t)),    # x tile
            ],
            out_specs=pl.BlockSpec((1, C, L), lambda b, t: (b, 0, t)),
        ),
        compiler_params=pltpu.CompilerParams(
            dimension_semantics=("parallel", "parallel"),
            vmem_limit_bytes=_vmem_limit_bytes(
                [S * part_bytes, tile_bytes, tile_bytes], vmem_clamp)),
        input_output_aliases=({2: 0} if donate_x else {}),
    )(w2d, pmax, x_flat)
    return out_flat.reshape(B, C, H, W)


# --------------------------------------------------------------------------
# pure-JAX reference (mirrors the PyTorch forward exactly)
# --------------------------------------------------------------------------
def eca_net_reference(x, conv_weight):
    B, C, H, W = x.shape
    k = conv_weight.shape[-1]
    pad = k // 2
    m = jnp.max(x.astype(jnp.float32), axis=(2, 3))                 # (B, C)
    m_pad = jnp.pad(m, ((0, 0), (pad, pad)))
    w = conv_weight.reshape(k).astype(jnp.float32)
    conv = sum(w[j] * m_pad[:, j:j + C] for j in range(k))          # (B, C)
    attn = jax.nn.sigmoid(conv)
    return (attn[:, :, None, None] * x.astype(jnp.float32)).astype(x.dtype)


# --------------------------------------------------------------------------
# test
# --------------------------------------------------------------------------
if __name__ == "__main__":
    def eca_kernel_size(c, gamma=2, beta=1):
        k = int(abs((math.log(c, 2) + beta) / gamma))
        return k if k % 2 else k + 1

    def make_inputs(key, B, C, H, W, dtype=jnp.float32):
        k = eca_kernel_size(C)
        kx, kw = jax.random.split(key)
        x = jax.random.normal(kx, (B, C, H, W), dtype=jnp.float32).astype(dtype)
        bound = 1.0 / math.sqrt(1 * k)       # Conv1d default init bound
        w = jax.random.uniform(kw, (1, 1, k), minval=-bound, maxval=bound,
                               dtype=jnp.float32)
        return x, w

    root = jax.random.PRNGKey(0)
    keys = jax.random.split(root, 4)

    # 1) small f32, auto -> fused single-pass path
    x1, w1 = make_inputs(keys[0], 2, 8, 16, 16)
    ref1 = eca_net_reference(x1, w1)
    out1 = jax.block_until_ready(eca_net_forward(x1, w1))
    assert out1.shape == x1.shape and out1.dtype == x1.dtype
    assert jnp.allclose(out1, ref1, atol=1e-5, rtol=1e-5), "fused f32 mismatch"

    # 2) same inputs forced through the tiled path (L=128 -> T=2, split S=2)
    out1t = jax.block_until_ready(
        eca_net_forward(x1, w1, mode="tiled", max_hw_tile_lanes=128))
    assert jnp.allclose(out1t, ref1, atol=1e-5, rtol=1e-5), "tiled f32 mismatch"

    # 3) B=1 multi-tile (HW=1024, L=256 -> T=4, S=2): core-parallel reduce split
    x2, w2 = make_inputs(keys[1], 1, 16, 32, 32)
    ref2 = eca_net_reference(x2, w2)
    out2 = jax.block_until_ready(
        eca_net_forward(x2, w2, mode="tiled", max_hw_tile_lanes=256))
    assert jnp.allclose(out2, ref2, atol=1e-5, rtol=1e-5), "split-reduce mismatch"

    # 4) HW not a multiple of 128 (20x20=400), forced tiling -> masked last tile
    x3, w3 = make_inputs(keys[2], 2, 8, 20, 20)
    ref3 = eca_net_reference(x3, w3)
    out3 = jax.block_until_ready(
        eca_net_forward(x3, w3, mode="tiled", max_hw_tile_lanes=128))
    assert jnp.allclose(out3, ref3, atol=1e-5, rtol=1e-5), "masked-tail mismatch"

    # 5) bf16 I/O exercises the native-dtype multiply/store path
    x4, w4 = make_inputs(keys[3], 2, 16, 32, 32, dtype=jnp.bfloat16)
    out4 = jax.block_until_ready(eca_net_forward(x4, w4))
    ref4 = eca_net_reference(x4, w4)
    assert out4.dtype == jnp.bfloat16
    assert jnp.allclose(out4.astype(jnp.float32), ref4.astype(jnp.float32),
                        atol=5e-2, rtol=5e-2), "bf16 mismatch"

    print("KERNEL_OK")
</pallas_src>

<mosaic_0001>
module attributes {stable_mosaic.version = 11 : i64} {
  func.func @_eca_fused_kernel(%arg0: i32, %arg1: memref<1x3xf32, #tpu.memory_space<smem>>, %arg2: memref<1x8x256xf32, #tpu.memory_space<vmem>>, %arg3: memref<1x8x256xf32, #tpu.memory_space<vmem>>) attributes {dimension_semantics = [#tpu.dimension_semantics<parallel>], iteration_bounds = array<i64: 2>, scalar_prefetch = 0 : i64, scratch_operands = 0 : i64, tpu.core_type = #tpu.core_type<tc>, window_params = [{transform_indices = @transform_0, window_bounds = array<i64: 1, 3>}, {transform_indices = @transform_1, window_bounds = array<i64: 1, 8, 256>}, {transform_indices = @transform_2, window_bounds = array<i64: 1, 8, 256>}]} {
    %c0 = arith.constant 0 : index
    %c0_0 = arith.constant 0 : index
    %c0_1 = arith.constant 0 : index
    %0 = vector.load %arg2[%c0, %c0_0, %c0_1] : memref<1x8x256xf32, #tpu.memory_space<vmem>>, vector<1x8x256xf32>
    %1 = vector.extract_strided_slice %0 {offsets = [0, 0, 0], sizes = [1, 8, 128], strides = [1, 1, 1]} : vector<1x8x256xf32> to vector<1x8x128xf32>
    %2 = vector.extract_strided_slice %0 {offsets = [0, 0, 128], sizes = [1, 8, 128], strides = [1, 1, 1]} : vector<1x8x256xf32> to vector<1x8x128xf32>
    %3 = arith.maximumf %1, %2 : vector<1x8x128xf32>
    %cst = arith.constant dense<0xFF800000> : vector<1x8xf32>
    %4 = vector.multi_reduction <maximumf>, %3, %cst [2] : vector<1x8x128xf32> to vector<1x8xf32>
    %cst_2 = arith.constant 0.000000e+00 : f32
    %5 = vector.broadcast %cst_2 : f32 to vector<1x1xf32>
    %6 = tpu.concatenate %5, %4, %5 in 1 : vector<1x1xf32>, vector<1x8xf32>, vector<1x1xf32> -> vector<1x10xf32>
    %cst_3 = arith.constant 0.000000e+00 : f32
    %7 = vector.broadcast %cst_3 : f32 to vector<1x8xf32>
    %c0_4 = arith.constant 0 : index
    %c0_5 = arith.constant 0 : index
    %8 = memref.load %arg1[%c0_4, %c0_5] : memref<1x3xf32, #tpu.memory_space<smem>>
    %9 = vector.extract_strided_slice %6 {offsets = [0, 0], sizes = [1, 8], strides = [1, 1]} : vector<1x10xf32> to vector<1x8xf32>
    %10 = vector.broadcast %8 : f32 to vector<1x8xf32>
    %11 = arith.mulf %10, %9 : vector<1x8xf32>
    %12 = arith.addf %7, %11 : vector<1x8xf32>
    %c0_6 = arith.constant 0 : index
    %c1 = arith.constant 1 : index
    %13 = memref.load %arg1[%c0_6, %c1] : memref<1x3xf32, #tpu.memory_space<smem>>
    %14 = vector.extract_strided_slice %6 {offsets = [0, 1], sizes = [1, 8], strides = [1, 1]} : vector<1x10xf32> to vector<1x8xf32>
    %15 = vector.broadcast %13 : f32 to vector<1x8xf32>
    %16 = arith.mulf %15, %14 : vector<1x8xf32>
    %17 = arith.addf %12, %16 : vector<1x8xf32>
    %c0_7 = arith.constant 0 : index
    %c2 = arith.constant 2 : index
    %18 = memref.load %arg1[%c0_7, %c2] : memref<1x3xf32, #tpu.memory_space<smem>>
    %19 = vector.extract_strided_slice %6 {offsets = [0, 2], sizes = [1, 8], strides = [1, 1]} : vector<1x10xf32> to vector<1x8xf32>
    %20 = vector.broadcast %18 : f32 to vector<1x8xf32>
    %21 = arith.mulf %20, %19 : vector<1x8xf32>
    %22 = arith.addf %17, %21 : vector<1x8xf32>
    %23 = arith.negf %22 : vector<1x8xf32>
    %24 = math.exp %23 : vector<1x8xf32>
    %cst_8 = arith.constant 1.000000e+00 : f32
    %25 = vector.broadcast %cst_8 : f32 to vector<1x8xf32>
    %26 = arith.addf %25, %24 : vector<1x8xf32>
    %27 = arith.divf %25, %26 : vector<1x8xf32>
    %28 = vector.shape_cast %27 : vector<1x8xf32> to vector<1x8x1xf32>
    %29 = vector.broadcast %28 : vector<1x8x1xf32> to vector<1x8x256xf32>
    %30 = arith.mulf %0, %29 : vector<1x8x256xf32>
    %c0_9 = arith.constant 0 : index
    %c0_10 = arith.constant 0 : index
    %c0_11 = arith.constant 0 : index
    %31 = vector.load %arg3[%c0_9, %c0_10, %c0_11] : memref<1x8x256xf32, #tpu.memory_space<vmem>>, vector<1x8x256xf32>
    tpu.vector_store %arg3[%c0_9, %c0_10, %c0_11], %30 {strides = array<i32>} : memref<1x8x256xf32, #tpu.memory_space<vmem>>, vector<1x8x256xf32>,
    return
  }
  func.func @transform_0(%arg0: i32) -> (i32, i32) {
    %c0_i32 = arith.constant 0 : i32
    %c0_i32_0 = arith.constant 0 : i32
    %c0_i32_1 = arith.constant 0 : i32
    return %c0_i32, %c0_i32_0 : i32, i32
  }
  func.func @transform_1(%arg0: i32) -> (i32, i32, i32) {
    %c0_i32 = arith.constant 0 : i32
    %c0_i32_0 = arith.constant 0 : i32
    %c0_i32_1 = arith.constant 0 : i32
    return %arg0, %c0_i32, %c0_i32_0 : i32, i32, i32
  }
  func.func @transform_2(%arg0: i32) -> (i32, i32, i32) {
    %c0_i32 = arith.constant 0 : i32
    %c0_i32_0 = arith.constant 0 : i32
    %c0_i32_1 = arith.constant 0 : i32
    return %arg0, %c0_i32, %c0_i32_0 : i32, i32, i32
  }
}

</mosaic_0001>

<llo_original>
// kernel: tpu_custom_call.1
$region0: #{tpu_custom_call.1}
  #allocation0 [shape = 'u32[]', space=smem, size = 0x4, offset = 0x4, fixed_abs, tag = 'smem constant byte address 0x4 - core index']
  #allocation1 [shape = 'u32[144,128]{1,0:T(1,128)}', space=vmem, size = 0x12000, scoped, tag = 'internal scratch']
  %s0 = inlined_call_operand.hbm [shape: f32[1,3], index: 0, kind: input, shape index: {}]
  %s1 = inlined_call_operand.hbm [shape: f32[2,8,256], index: 1, kind: input, shape index: {}]
  %s2 = inlined_call_operand.hbm [shape: f32[2,8,256], index: 2, kind: output, shape index: {}]
  %s3 = sld [smem:[#allocation0]]
  $region49: #{tpu_custom_call.1} parent=0
    _
  %s5 = ssub.s32 1, %s3
  %s6 = scalar_select 0, %s5, %s3
  $region1: #{tpu_custom_call.1} parent=0
    #allocation2 [shape = 'u8[512]{0}', space=smem, size = 0x200, scoped, tag = 'input window, operand 0, single buffered']
    #allocation3 [shape = 's32[2]{0}', space=sflag, size = 0x8, scoped, tag = 'scoped memory for tpu_custom_call.1']
    #allocation4 [shape = 's32[2]{0}', space=sflag, size = 0x8, scoped, tag = 'scoped memory for tpu_custom_call.1']
    #allocation5 [shape = 's32[2]{0}', space=sflag, size = 0x8, scoped, tag = 'scoped memory for tpu_custom_call.1']
    #allocation6 [shape = 'u8[16384]{0}', space=vmem, size = 0x4000, scoped, tag = 'input window, operand 1']
    #allocation7 [shape = 'u8[16384]{0}', space=vmem, size = 0x4000, scoped, tag = 'output window, operand 0']
    %7 = vsyncpa [#allocation5], 0
    %8 = vsyncpa [#allocation3], 0
    %s9 = scalar_lea.sflag [#allocation3], 1
    %10 = vsyncpa %s9, 0
    %11 = vsyncpa [#allocation4], 0
    %s12 = scalar_lea.sflag [#allocation4], 1
    %13 = vsyncpa %s12, 0
    loop: start=0, step=1, limit=4
    $region2: #{tpu_custom_call.1} parent=1 // loop_pre_header
      _
    $region3: #{tpu_custom_call.1} parent=1 // loop_header
      %s15 = sphi 0, %s19
      %p16 = scmp.ge.s32.totalorder %s15, 4
      %s23 = sphi 0, %s23
      %s25 = sphi 0, %s23
      %s26 = sphi 0, %s25
      %s40 = sphi 0, %s26
      %s46 = sphi 0, %s48
      %s49 = sphi 0, %s46
      %s50 = sphi 0, %s49
      %s66 = sphi 0, %s50
      %s72 = sphi 0, %s74
      %s75 = sphi 0, %s72
      %s76 = sphi 0, %s75
      %s92 = sphi 0, %s76
    $region4: #{tpu_custom_call.1} parent=1 // loop_header_branch
      %18 = sbr.rel (%p16) target = $region8
    $region5: #{tpu_custom_call.1} parent=1 // loop_body
      %s20 = ssub.s32 %s15, 1
      %s21 = ssub.s32 %s15, 2
      %s22 = sadd.s32 %s15, 1
      %s24 = sadd.s32 %s23, 1
      %p27 = scmp.eq.s32.totalorder %s15, 1
      %p28 = scmp.ne.s32.totalorder %s23, %s25
      %p29 = scmp.eq.s32.totalorder %s15, 0
      %p30 = por %p28, %p29
      %p31 = scmp.ne.s32.totalorder %s23, %s25
      %p32 = scmp.eq.s32.totalorder %s20, 1
      %p33 = por %p31, %p32
      %p34 = scmp.ne.s32.totalorder %s25, %s26
      %p35 = scmp.eq.s32.totalorder %s20, 0
      %p36 = por %p34, %p35
      %p37 = scmp.ne.s32.totalorder %s25, %s26
      %p38 = scmp.eq.s32.totalorder %s21, 1
      %p39 = por %p37, %p38
      %p41 = scmp.ne.s32.totalorder %s26, %s40
      %p42 = scmp.eq.s32.totalorder %s21, 0
      %p43 = por %p41, %p42
      %s44 = ssub.s32 %s15, %s22
      %p45 = scmp.eq.s32.totalorder %s44, 0
      %s47 = sadd.s32 %s46, 1
      %s48 = scalar_select %p45, %s46, %s47
      %p51 = pneg %p45
      %p52 = scmp.eq.s32.totalorder %s15, 1
      %p53 = por %p51, %p52
      %p54 = scmp.ne.s32.totalorder %s46, %s49
      %p55 = scmp.eq.s32.totalorder %s15, 0
      %p56 = por %p54, %p55
      %p57 = scmp.ne.s32.totalorder %s46, %s49
      %p58 = scmp.eq.s32.totalorder %s20, 1
      %p59 = por %p57, %p58
      %p60 = scmp.ne.s32.totalorder %s49, %s50
      %p61 = scmp.eq.s32.totalorder %s20, 0
      %p62 = por %p60, %p61
      %p63 = scmp.ne.s32.totalorder %s49, %s50
      %p64 = scmp.eq.s32.totalorder %s21, 1
      %p65 = por %p63, %p64
      %p67 = scmp.ne.s32.totalorder %s50, %s66
      %p68 = scmp.eq.s32.totalorder %s21, 0
      %p69 = por %p67, %p68
      %s70 = ssub.s32 %s15, %s22
      %p71 = scmp.eq.s32.totalorder %s70, 0
      %s73 = sadd.s32 %s72, 1
      %s74 = scalar_select %p71, %s72, %s73
      %p77 = pneg %p71
      %p78 = scmp.eq.s32.totalorder %s15, 1
      %p79 = por %p77, %p78
      %p80 = scmp.ne.s32.totalorder %s72, %s75
      %p81 = scmp.eq.s32.totalorder %s15, 0
      %p82 = por %p80, %p81
      %p83 = scmp.ne.s32.totalorder %s72, %s75
      %p84 = scmp.eq.s32.totalorder %s20, 1
      %p85 = por %p83, %p84
      %p86 = scmp.ne.s32.totalorder %s75, %s76
      %p87 = scmp.eq.s32.totalorder %s20, 0
      %p88 = por %p86, %p87
      %p89 = scmp.ne.s32.totalorder %s75, %s76
      %p90 = scmp.eq.s32.totalorder %s21, 1
      %p91 = por %p89, %p90
      %p93 = scmp.ne.s32.totalorder %s76, %s92
      %p94 = scmp.eq.s32.totalorder %s21, 0
      %p95 = por %p93, %p94
      %p96 = scmp.le.s32.totalorder 1, %s15
      %p97 = scmp.lt.s32.totalorder %s15, 3
      %p98 = pnand %p96, %p97
      %p99 = pneg %p98
      // Predicated region
      $region9: #{tpu_custom_call.1} parent=5 // pred_check
        _
      $region10: #{tpu_custom_call.1} parent=5 // pred_check_branch
        %101 = sbr.rel (%p98) target = $region12
      $region11: #{tpu_custom_call.1} parent=5 // pred_region
        %s102 = ssub.s32 %s15, 1
        // Predicated region
        $region13: #{tpu_custom_call.1} parent=11 // pred_check
          %p103 = pneg %p36
        $region14: #{tpu_custom_call.1} parent=11 // pred_check_branch
          %105 = sbr.rel (%p103) target = $region16
        $region15: #{tpu_custom_call.1} parent=11 // pred_region
          %s107 = ssub.s32 16, 16
          %108 = vsyncadd [#allocation5], %s107
          %111 = dma.hbm_to_smem %s0, 16, [#allocation2], [#allocation5]
        $region16: #{tpu_custom_call.1} parent=11 // pred_fallthru
          _
      $region12: #{tpu_custom_call.1} parent=5 // pred_fallthru
        _
      %p112 = scmp.lt.s32.totalorder %s15, 2
      // Predicated region
      $region17: #{tpu_custom_call.1} parent=5 // pred_check
        %p113 = pneg %p112
      $region18: #{tpu_custom_call.1} parent=5 // pred_check_branch
        %115 = sbr.rel (%p113) target = $region20
      $region19: #{tpu_custom_call.1} parent=5 // pred_region
        // Predicated region
        $region21: #{tpu_custom_call.1} parent=19 // pred_check
          %p116 = pneg %p56
        $region22: #{tpu_custom_call.1} parent=19 // pred_check_branch
          %118 = sbr.rel (%p116) target = $region24
        $region23: #{tpu_custom_call.1} parent=19 // pred_region
          %s119 = sand.u32 %s46, 1
          %s120 = scalar_lea.sflag [#allocation3], %s119
          %s121 = sand.u32 %s46, 1
          %s122 = smul.addr %s121, 16
          %s123 = scalar_lea.vmem [#allocation6], %s122
          %s125 = ssub.s32 256, 256
          %126 = vsyncadd %s120, %s125
          %s127 = smul.addr %s15, 2
          %s128 = smul.addr %s127, 128
          %s129 = scalar_lea.hbm %s1, %s128
          %s131 = sshll.u32 %s123, 4
          %s132 = int_to_ptr.vmem [resolvable:$true] %s131
          %134 = dma.hbm_to_vmem [thread:$0]  %s129, 256, %s132, %s120
        $region24: #{tpu_custom_call.1} parent=19 // pred_fallthru
          _
      $region20: #{tpu_custom_call.1} parent=5 // pred_fallthru
        _
      %p135 = scmp.le.s32.totalorder 1, %s15
      %p136 = scmp.lt.s32.totalorder %s15, 3
      %p137 = pnand %p135, %p136
      %p138 = pneg %p137
      // Predicated region
      $region25: #{tpu_custom_call.1} parent=5 // pred_check
        _
      $region26: #{tpu_custom_call.1} parent=5 // pred_check_branch
        %140 = sbr.rel (%p137) target = $region28
      $region27: #{tpu_custom_call.1} parent=5 // pred_region
        %s141 = ssub.s32 %s15, 1
        // Predicated region
        $region29: #{tpu_custom_call.1} parent=27 // pred_check
          %p142 = pneg %p36
        $region30: #{tpu_custom_call.1} parent=27 // pred_check_branch
          %144 = sbr.rel (%p142) target = $region32
        $region31: #{tpu_custom_call.1} parent=27 // pred_region
          %145 = dma.done [#allocation5], 16
        $region32: #{tpu_custom_call.1} parent=27 // pred_fallthru
          _
        %s146 = sand.u32 %s49, 1
        %s147 = scalar_lea.sflag [#allocation3], %s146
        %s148 = sand.u32 %s49, 1
        %s149 = smul.addr %s148, 16
        %s150 = scalar_lea.vmem [#allocation6], %s149
        // Predicated region
        $region33: #{tpu_custom_call.1} parent=27 // pred_check
          %p151 = pneg %p62
        $region34: #{tpu_custom_call.1} parent=27 // pred_check_branch
          %153 = sbr.rel (%p151) target = $region36
        $region35: #{tpu_custom_call.1} parent=27 // pred_region
          %154 = dma.done %s147, 256
        $region36: #{tpu_custom_call.1} parent=27 // pred_fallthru
          _
        %155 = sfence
        %p156 = pneg %p36
        %p157 = pneg %p33
        %s158 = sand.u32 %s49, 1
        %s159 = scalar_lea.sflag [#allocation3], %s158
        %s160 = sand.u32 %s49, 1
        %s161 = smul.addr %s160, 16
        %s162 = scalar_lea.vmem [#allocation6], %s161
        %p163 = pneg %p62
        %p164 = pneg %p59
        %p165 = pneg %p88
        %p166 = pneg %p85
        %s167 = sand.u32 %s75, 1
        %s168 = scalar_lea.sflag [#allocation4], %s167
        %s169 = sand.u32 %s75, 1
        %s170 = smul.addr %s169, 16
        %s171 = scalar_lea.vmem [#allocation7], %s170
        %v172 = vld [vmem:[%s150] sm:$0xff]
        %v173 = vld [vmem:[%s150 + $0x8] sm:$0xff]
        %v174 = vmax.f32 %v172, %v173
        %175 = vmax.xlane.f32.xlu0 %v174
        %v176 = vpop.xlane.xlu0 %175
        %v178 = vlaneseq
        %v179 = vand.u32 %v178, 127
        %v180 = vadd.s32 %v179, 4294967295
        %v181 = vlaneseq
        %v182 = vshrl.u32 %v181, 7
        %v183 = vsub.s32 %v180, %v182
        %v184 = vrot.slane %v176, %v183
        %vm186 = vcmask 7168
        %v187 = vsel %vm186, 0.0, %v184
        %vm188 = vcmask 72704
        %v189 = vsel %vm188, %v187, 0.0
        %s190 = sld [smem:[#allocation2]]
        %v191 = vstv %s190
        %v192 = vmul.f32 %v191, %v189
        %v193 = vadd.f32 %v192, 0.0
        %s194 = sld [smem:[#allocation2 + $0x1]]
        %v195 = vstv %s194
        %v196 = vmul.f32 %v195, %v189
        %198 = vrot.lane.b32.xlu0 %v196, 127
        %v199 = vpop.permute.xlu0 %198
        %v201 = vadd.f32 %v193, %v199
        %s202 = sld [smem:[#allocation2 + $0x2]]
        %v203 = vstv %s202
        %v204 = vmul.f32 %v203, %v189
        %206 = vrot.lane.b32.xlu0 %v204, 126
        %v207 = vpop.permute.xlu0 %206
        %v209 = vadd.f32 %v201, %v207
        %v210 = vxor.u32 %v209, 2147483648
        %v211 = vmul.f32 %v210, 1.442695
        %v212 = vpow.pop %v211
        %v213 = vadd.f32 %v212, 1.0
        %v214 = vrcp.pop %v213
        %v215 = vmul.f32 1.0, %v214
        %v216 = vlaneseq
        %v217 = vshrl.u32 %v216, 7
        %v218 = vsub.s32 0, %v217
        %v219 = vrot.slane %v215, %v218
        %221 = vbcast.lane.b32.xlu0 %v219, 256
        %v222 = vpop.permute.xlu0 %221
        %v223 = vmul.f32 %v172, %v222
        %v224 = vmul.f32 %v173, %v222
        %225 = vst [vmem:[%s171] sm:$0xff] %v223
        %226 = vst [vmem:[%s171 + $0x8] sm:$0xff] %v224
        %s227 = sand.u32 %s75, 1
        %s228 = scalar_lea.sflag [#allocation4], %s227
        %s229 = sand.u32 %s75, 1
        %s230 = smul.addr %s229, 16
        %s231 = scalar_lea.vmem [#allocation7], %s230
        // Predicated region
        $region37: #{tpu_custom_call.1} parent=27 // pred_check
          %p232 = pneg %p85
        $region38: #{tpu_custom_call.1} parent=27 // pred_check_branch
          %234 = sbr.rel (%p232) target = $region40
        $region39: #{tpu_custom_call.1} parent=27 // pred_region
          %s236 = ssub.s32 256, 256
          %237 = vsyncadd %s228, %s236
          %s238 = smul.addr %s20, 2
          %s239 = smul.addr %s238, 128
          %s240 = scalar_lea.hbm %s2, %s239
          %s242 = sshll.u32 %s231, 4
          %s243 = int_to_ptr.vmem [resolvable:$true] %s242
          %245 = dma.vmem_to_hbm [thread:$0]  %s243, 256, %s240, %s228
        $region40: #{tpu_custom_call.1} parent=27 // pred_fallthru
          _
      $region28: #{tpu_custom_call.1} parent=5 // pred_fallthru
        _
      %p246 = scmp.le.s32.totalorder 2, %s15
      // Predicated region
      $region41: #{tpu_custom_call.1} parent=5 // pred_check
        %p247 = pneg %p246
      $region42: #{tpu_custom_call.1} parent=5 // pred_check_branch
        %249 = sbr.rel (%p247) target = $region44
      $region43: #{tpu_custom_call.1} parent=5 // pred_region
        %s250 = ssub.s32 %s15, 2
        // Predicated region
        $region45: #{tpu_custom_call.1} parent=43 // pred_check
          %p251 = pneg %p91
        $region46: #{tpu_custom_call.1} parent=43 // pred_check_branch
          %253 = sbr.rel (%p251) target = $region48
        $region47: #{tpu_custom_call.1} parent=43 // pred_region
          %s254 = sand.u32 %s76, 1
          %s255 = scalar_lea.sflag [#allocation4], %s254
          %s256 = sand.u32 %s76, 1
          %s257 = smul.addr %s256, 16
          %s258 = scalar_lea.vmem [#allocation7], %s257
          %259 = dma.done %s255, 256
        $region48: #{tpu_custom_call.1} parent=43 // pred_fallthru
          _
      $region44: #{tpu_custom_call.1} parent=5 // pred_fallthru
        _
    $region6: #{tpu_custom_call.1} parent=1 // loop_footer
      %s19 = sadd.s32 1, %s15
    $region7: #{tpu_custom_call.1} parent=1 // loop_footer_branch
      %14 = sbr.rel target = $region3
    $region8: #{tpu_custom_call.1} parent=1 // loop_exit
      _
    %260 = vsyncpa [#allocation3], 1
    %s261 = scalar_lea.sflag [#allocation3], 1
    %262 = vsyncpa %s261, 1
    %263 = vsyncpa [#allocation4], 1
    %s264 = scalar_lea.sflag [#allocation4], 1
    %265 = vsyncpa %s264, 1
    %266 = vsyncpa [#allocation5], 1
    %s267 = scalar_lea.sflag [#allocation5], 1
    %268 = vsyncpa %s267, 1

</llo_original>
